<compile_context>
chip_gen: v7x
topology: tpu7x:2x2x1
jax: 0.10.0
libtpu: 0.0.40
codegen_flags: <defaults>
</compile_context>

<pallas_src>
import jax
import jax.numpy as jnp
from jax.experimental import pallas as pl
from jax.experimental.pallas import tpu as pltpu

EPS = 1e-5
SLOPE = 0.1
LANE = 128


# ----------------------------- small helpers -------------------------------
def _round_up(n, m):
    return ((n + m - 1) // m) * m


def _pick_tile(out_channel):
    for t in (256, 128, 64, 32, 16, 8):
        if out_channel % t == 0:
            return t
    return out_channel


def _lrelu(h):
    return jnp.where(h >= 0, h, SLOPE * h)


def _bn_masked(h, gamma, beta, mask, inv_n):
    # Training-mode BatchNorm1d with masked batch stats (biased variance).
    # Single reduction pass: var = E[h^2] - mean^2, clamped to >= 0.
    hm = h * mask
    mean = jnp.sum(hm, axis=1, keepdims=True) * inv_n
    msq = jnp.sum(hm * h, axis=1, keepdims=True) * inv_n
    var = jnp.maximum(msq - mean * mean, 0.0)
    return (h - mean) * jax.lax.rsqrt(var + EPS) * gamma + beta


# ------------------------------ fused kernel -------------------------------
def _make_kernel(out_channel, in_channel, n_stage1, n_stage2):
    O, C = out_channel, in_channel
    inv_n1 = 1.0 / float(n_stage1)   # = 1 / (B * L)
    inv_n2 = 1.0 / float(n_stage2)   # = 1 / (B * T)

    def kernel(masks_ref, xe_ref, xo_ref, xp_ref,
               w1a_ref, p1_ref, w1b_ref, w2_ref, p2_ref,
               o_ref, h1_s):
        m = masks_ref[...]
        mask_e = m[0:1, :]   # valid output / even-tap lanes   (t <  T)
        mask_o = m[1:2, :]   # valid next-odd-tap lanes        (t <  To)
        mask_p = m[2:3, :]   # valid prev-odd-tap lanes        (1 <= t <= To)

        # ---- stage 1 (grid step 0 only): h1 = lrelu(bn(W1a @ x + b1a)) ----
        # Stored in VMEM scratch, tap-stacked, never written to HBM.
        @pl.when(pl.program_id(0) == 0)
        def _():
            p1 = p1_ref[...]
            b1a, g1a, be1a = p1[:, 0:1], p1[:, 1:2], p1[:, 2:3]
            w1a = w1a_ref[...]
            he = jnp.dot(w1a, xe_ref[...], preferred_element_type=jnp.float32) + b1a
            ho = jnp.dot(w1a, xo_ref[...], preferred_element_type=jnp.float32) + b1a
            hp = jnp.dot(w1a, xp_ref[...], preferred_element_type=jnp.float32) + b1a
            # Even + odd streams are disjoint and cover all B*L positions.
            mean = (jnp.sum(he * mask_e, axis=1, keepdims=True)
                    + jnp.sum(ho * mask_o, axis=1, keepdims=True)) * inv_n1
            msq = (jnp.sum(he * he * mask_e, axis=1, keepdims=True)
                   + jnp.sum(ho * ho * mask_o, axis=1, keepdims=True)) * inv_n1
            rs = jax.lax.rsqrt(jnp.maximum(msq - mean * mean, 0.0) + EPS)

            def act(h, mask):
                # Masking re-creates the zero padding needed by the k=3 conv.
                return _lrelu((h - mean) * rs * g1a + be1a) * mask

            h1_s[0:O, :] = act(hp, mask_p)           # tap k=0 : h1[2t-1]
            h1_s[O:2 * O, :] = act(he, mask_e)       # tap k=1 : h1[2t]
            h1_s[2 * O:3 * O, :] = act(ho, mask_o)   # tap k=2 : h1[2t+1]

        # -------- stage 2 (per output-channel tile) --------
        p2 = p2_ref[...]
        b1b, g1b, be1b = p2[:, 0:1], p2[:, 1:2], p2[:, 2:3]
        b2, g2, be2 = p2[:, 3:4], p2[:, 4:5], p2[:, 5:6]
        g3, be3 = p2[:, 6:7], p2[:, 7:8]

        # conv1[3]: Conv1d(O, O, k=3, s=2, p=1) == ONE matmul vs tap-stacked h1.
        u = jnp.dot(w1b_ref[...], h1_s[...],
                    preferred_element_type=jnp.float32) + b1b
        a1 = _lrelu(_bn_masked(u, g1b, be1b, mask_e, inv_n2))

        # conv2: Conv1d(C, O, k=3, s=2, p=1) == 3-tap accumulation on x streams.
        w2 = w2_ref[...]
        v = (jnp.dot(w2[:, 0:C], xp_ref[...], preferred_element_type=jnp.float32)
             + jnp.dot(w2[:, C:2 * C], xe_ref[...], preferred_element_type=jnp.float32)
             + jnp.dot(w2[:, 2 * C:3 * C], xo_ref[...], preferred_element_type=jnp.float32)
             + b2)
        a2 = _bn_masked(v, g2, be2, mask_e, inv_n2)

        # conv3: BN + LeakyReLU of the elementwise branch product.
        o_ref[...] = _lrelu(_bn_masked(a1 * a2, g3, be3, mask_e, inv_n2))

    return kernel


# --------------------------------- wrapper ---------------------------------
def resnet_ibn_forward(x, p):
    B, C, L = x.shape
    O = p["w1a"].shape[0]
    T = (L - 1) // 2 + 1          # conv output length (k=3, s=2, p=1)
    To = L // 2                   # number of odd input positions
    TP = _round_up(T, LANE)       # lane-dense per-batch segment
    if To >= TP:                  # (only possible if L even and T % 128 == 0)
        TP += LANE
    NP = B * TP

    # De-interleaved x streams: even taps, next-odd taps, prev-odd taps.
    xt = x.transpose(1, 0, 2).astype(jnp.float32)                       # (C,B,L)
    xe = jnp.pad(xt[:, :, 0::2], ((0, 0), (0, 0), (0, TP - T))).reshape(C, NP)
    xo = jnp.pad(xt[:, :, 1::2], ((0, 0), (0, 0), (0, TP - To))).reshape(C, NP)
    xp = jnp.pad(xt[:, :, 1::2], ((0, 0), (0, 0), (1, TP - To - 1))).reshape(C, NP)

    # Per-lane validity masks (per-batch segment of TP lanes).
    t_idx = jnp.arange(TP)
    rows = jnp.stack(
        [(t_idx < T).astype(jnp.float32),
         (t_idx < To).astype(jnp.float32),
         ((t_idx >= 1) & (t_idx <= To)).astype(jnp.float32)]
        + [jnp.zeros((TP,), jnp.float32)] * 5, axis=0)                  # (8, TP)
    masks = jnp.tile(rows, (1, B))                                       # (8, NP)

    # Packed per-channel params: 2 small slabs instead of 11 (O,1) operands.
    p1 = jnp.concatenate([p["b1a"], p["g1a"], p["be1a"]], axis=1)        # (O, 3)
    p2 = jnp.concatenate([p["b1b"], p["g1b"], p["be1b"],
                          p["b2"], p["g2"], p["be2"],
                          p["g3"], p["be3"]], axis=1)                    # (O, 8)

    TO = _pick_tile(O)
    kernel = _make_kernel(O, C, B * L, B * T)

    flops = 2 * NP * (3 * O * C + 3 * O * O + 3 * O * C)
    bytes_accessed = 4 * (8 * NP + 3 * C * NP + O * C + 3 * O
                          + 3 * O * O + 3 * O * C + 8 * O + O * NP)

    out2d = pl.pallas_call(
        kernel,
        out_shape=jax.ShapeDtypeStruct((O, NP), jnp.float32),
        grid_spec=pltpu.PrefetchScalarGridSpec(
            num_scalar_prefetch=0,
            grid=(O // TO,),
            in_specs=[
                pl.BlockSpec((8, NP), lambda i: (0, 0)),        # masks
                pl.BlockSpec((C, NP), lambda i: (0, 0)),        # x even taps
                pl.BlockSpec((C, NP), lambda i: (0, 0)),        # x next-odd taps
                pl.BlockSpec((C, NP), lambda i: (0, 0)),        # x prev-odd taps
                pl.BlockSpec((O, C), lambda i: (0, 0)),         # W1a (full)
                pl.BlockSpec((O, 3), lambda i: (0, 0)),         # stage-1 params
                pl.BlockSpec((TO, 3 * O), lambda i: (i, 0)),    # W1b taps (tile)
                pl.BlockSpec((TO, 3 * C), lambda i: (i, 0)),    # W2 taps (tile)
                pl.BlockSpec((TO, 8), lambda i: (i, 0)),        # stage-2 params
            ],
            out_specs=pl.BlockSpec((TO, NP), lambda i: (i, 0)),
            scratch_shapes=[pltpu.VMEM((3 * O, NP), jnp.float32)],  # tap-stacked h1
        ),
        compiler_params=pltpu.CompilerParams(
            # Channel axis stays sequential: tiles > 0 reuse the h1 scratch
            # written at step 0 (fusion / no HBM round trip beats megacore here).
            dimension_semantics=("arbitrary",),
            vmem_limit_bytes=48 * 1024 * 1024,
        ),
        cost_estimate=pl.CostEstimate(
            flops=int(flops), transcendentals=int(4 * O),
            bytes_accessed=int(bytes_accessed)),
    )(masks, xe, xo, xp, p["w1a"], p1, p["w1b_taps"], p["w2_taps"], p2)

    # TODO(synk): for very large B*L / channel counts, tile the lane (N) axis
    # with a two-pass masked BN so the resident set fits v7x's 64 MiB VMEM.
    out = out2d.reshape(O, B, TP)[:, :, :T]
    return out.transpose(1, 0, 2)                                       # (B, O, T)


# ------------------------------ params / ref --------------------------------
def init_params(key, in_channel, out_channel):
    ks = jax.random.split(key, 16)

    def nrm(k, shape, scale=0.1):
        return scale * jax.random.normal(k, shape, jnp.float32)

    w1b = nrm(ks[2], (out_channel, out_channel, 3))
    w2 = nrm(ks[4], (out_channel, in_channel, 3))
    p = {
        "w1a": nrm(ks[0], (out_channel, in_channel)),
        "b1a": nrm(ks[1], (out_channel, 1)),
        "w1b": w1b,
        "w1b_taps": w1b.transpose(0, 2, 1).reshape(out_channel, 3 * out_channel),
        "b1b": nrm(ks[3], (out_channel, 1)),
        "w2": w2,
        "w2_taps": w2.transpose(0, 2, 1).reshape(out_channel, 3 * in_channel),
        "b2": nrm(ks[5], (out_channel, 1)),
        "g1a": 1.0 + nrm(ks[6], (out_channel, 1)), "be1a": nrm(ks[7], (out_channel, 1)),
        "g1b": 1.0 + nrm(ks[8], (out_channel, 1)), "be1b": nrm(ks[9], (out_channel, 1)),
        "g2": 1.0 + nrm(ks[10], (out_channel, 1)), "be2": nrm(ks[11], (out_channel, 1)),
        "g3": 1.0 + nrm(ks[12], (out_channel, 1)), "be3": nrm(ks[13], (out_channel, 1)),
    }
    return p


def reference_forward(x, p):
    # Pure-JAX reference of the PyTorch forward (training-mode BN).
    def conv1d(x, w, b, stride, pad):
        y = jax.lax.conv_general_dilated(
            x, w, window_strides=(stride,), padding=[(pad, pad)],
            dimension_numbers=("NCH", "OIH", "NCH"),
            precision=jax.lax.Precision.HIGHEST)
        return y + b.reshape(1, -1, 1)

    def bn(x, g, be):
        mean = x.mean(axis=(0, 2), keepdims=True)
        var = ((x - mean) ** 2).mean(axis=(0, 2), keepdims=True)
        return (x - mean) / jnp.sqrt(var + EPS) * g.reshape(1, -1, 1) + be.reshape(1, -1, 1)

    def lr(x):
        return jnp.where(x >= 0, x, SLOPE * x)

    h = lr(bn(conv1d(x, p["w1a"][:, :, None], p["b1a"][:, 0], 1, 0), p["g1a"], p["be1a"]))
    h = lr(bn(conv1d(h, p["w1b"], p["b1b"][:, 0], 2, 1), p["g1b"], p["be1b"]))
    v = bn(conv1d(x, p["w2"], p["b2"][:, 0], 2, 1), p["g2"], p["be2"])
    return lr(bn(h * v, p["g3"], p["be3"]))


# ---------------------------------- main ------------------------------------
if __name__ == "__main__":
    key = jax.random.PRNGKey(0)
    kx, kp = jax.random.split(key)
    B, Cin, Cout, L = 2, 4, 8, 16
    x = jax.random.normal(kx, (B, Cin, L), jnp.float32)
    params = init_params(kp, Cin, Cout)

    out = jax.block_until_ready(resnet_ibn_forward(x, params))
    ref = jax.block_until_ready(reference_forward(x, params))

    T = (L + 2 - 3) // 2 + 1
    assert out.shape == (B, Cout, T), out.shape
    assert bool(jnp.all(jnp.isfinite(out)))
    assert bool(jnp.allclose(out, ref, atol=1e-3, rtol=1e-3)), \
        float(jnp.max(jnp.abs(out - ref)))
    print("KERNEL_OK")
</pallas_src>

<mosaic_0001>
module attributes {stable_mosaic.version = 11 : i64} {
  func.func @kernel(%arg0: i32, %arg1: memref<8x256xf32, #tpu.memory_space<vmem>>, %arg2: memref<4x256xf32, #tpu.memory_space<vmem>>, %arg3: memref<4x256xf32, #tpu.memory_space<vmem>>, %arg4: memref<4x256xf32, #tpu.memory_space<vmem>>, %arg5: memref<8x4xf32, #tpu.memory_space<vmem>>, %arg6: memref<8x3xf32, #tpu.memory_space<vmem>>, %arg7: memref<8x24xf32, #tpu.memory_space<vmem>>, %arg8: memref<8x12xf32, #tpu.memory_space<vmem>>, %arg9: memref<8x8xf32, #tpu.memory_space<vmem>>, %arg10: memref<8x256xf32, #tpu.memory_space<vmem>>, %arg11: memref<24x256xf32, #tpu.memory_space<vmem>>) attributes {dimension_semantics = [#tpu.dimension_semantics<arbitrary>], iteration_bounds = array<i64: 1>, scalar_prefetch = 0 : i64, scratch_operands = 1 : i64, tpu.core_type = #tpu.core_type<tc>, window_params = [{pipeline_mode = #tpu.pipeline_mode<synchronous>, transform_indices = @transform_0, window_bounds = array<i64: 8, 256>}, {pipeline_mode = #tpu.pipeline_mode<synchronous>, transform_indices = @transform_1, window_bounds = array<i64: 4, 256>}, {pipeline_mode = #tpu.pipeline_mode<synchronous>, transform_indices = @transform_2, window_bounds = array<i64: 4, 256>}, {pipeline_mode = #tpu.pipeline_mode<synchronous>, transform_indices = @transform_3, window_bounds = array<i64: 4, 256>}, {pipeline_mode = #tpu.pipeline_mode<synchronous>, transform_indices = @transform_4, window_bounds = array<i64: 8, 4>}, {pipeline_mode = #tpu.pipeline_mode<synchronous>, transform_indices = @transform_5, window_bounds = array<i64: 8, 3>}, {transform_indices = @transform_6, window_bounds = array<i64: 8, 24>}, {transform_indices = @transform_7, window_bounds = array<i64: 8, 12>}, {transform_indices = @transform_8, window_bounds = array<i64: 8, 8>}, {transform_indices = @transform_9, window_bounds = array<i64: 8, 256>}]} {
    %c0 = arith.constant 0 : index
    %c0_0 = arith.constant 0 : index
    %0 = vector.load %arg1[%c0, %c0_0] : memref<8x256xf32, #tpu.memory_space<vmem>>, vector<8x256xf32>
    %1 = vector.extract_strided_slice %0 {offsets = [0, 0], sizes = [1, 256], strides = [1, 1]} : vector<8x256xf32> to vector<1x256xf32>
    %2 = vector.extract_strided_slice %0 {offsets = [1, 0], sizes = [1, 256], strides = [1, 1]} : vector<8x256xf32> to vector<1x256xf32>
    %3 = vector.extract_strided_slice %0 {offsets = [2, 0], sizes = [1, 256], strides = [1, 1]} : vector<8x256xf32> to vector<1x256xf32>
    %c0_i32 = arith.constant 0 : i32
    %4 = arith.cmpi eq, %arg0, %c0_i32 : i32
    %5 = arith.extui %4 : i1 to i32
    %c0_i32_1 = arith.constant 0 : i32
    %6 = arith.cmpi ne, %5, %c0_i32_1 : i32
    scf.if %6 {
      %c0_43 = arith.constant 0 : index
      %c0_44 = arith.constant 0 : index
      %125 = vector.load %arg6[%c0_43, %c0_44] : memref<8x3xf32, #tpu.memory_space<vmem>>, vector<8x3xf32>
      %126 = vector.extract_strided_slice %125 {offsets = [0, 0], sizes = [8, 1], strides = [1, 1]} : vector<8x3xf32> to vector<8x1xf32>
      %127 = vector.extract_strided_slice %125 {offsets = [0, 1], sizes = [8, 1], strides = [1, 1]} : vector<8x3xf32> to vector<8x1xf32>
      %128 = vector.extract_strided_slice %125 {offsets = [0, 2], sizes = [8, 1], strides = [1, 1]} : vector<8x3xf32> to vector<8x1xf32>
      %c0_45 = arith.constant 0 : index
      %c0_46 = arith.constant 0 : index
      %129 = vector.load %arg5[%c0_45, %c0_46] : memref<8x4xf32, #tpu.memory_space<vmem>>, vector<8x4xf32>
      %c0_47 = arith.constant 0 : index
      %c0_48 = arith.constant 0 : index
      %130 = vector.load %arg2[%c0_47, %c0_48] : memref<4x256xf32, #tpu.memory_space<vmem>>, vector<4x256xf32>
      %cst_49 = arith.constant dense<0.000000e+00> : vector<8x256xf32>
      %131 = tpu.matmul %129, %130, %cst_49 {dimension_numbers = #tpu.dot_dimension_numbers<[1], [0], [0], [1], [0, 0, 1, 1], [], []>} : vector<8x4xf32>, vector<4x256xf32>, vector<8x256xf32> -> vector<8x256xf32>
      %132 = vector.broadcast %126 : vector<8x1xf32> to vector<8x256xf32>
      %133 = arith.addf %131, %132 : vector<8x256xf32>
      %c0_50 = arith.constant 0 : index
      %c0_51 = arith.constant 0 : index
      %134 = vector.load %arg3[%c0_50, %c0_51] : memref<4x256xf32, #tpu.memory_space<vmem>>, vector<4x256xf32>
      %cst_52 = arith.constant dense<0.000000e+00> : vector<8x256xf32>
      %135 = tpu.matmul %129, %134, %cst_52 {dimension_numbers = #tpu.dot_dimension_numbers<[1], [0], [0], [1], [0, 0, 1, 1], [], []>} : vector<8x4xf32>, vector<4x256xf32>, vector<8x256xf32> -> vector<8x256xf32>
      %136 = vector.broadcast %126 : vector<8x1xf32> to vector<8x256xf32>
      %137 = arith.addf %135, %136 : vector<8x256xf32>
      %c0_53 = arith.constant 0 : index
      %c0_54 = arith.constant 0 : index
      %138 = vector.load %arg4[%c0_53, %c0_54] : memref<4x256xf32, #tpu.memory_space<vmem>>, vector<4x256xf32>
      %cst_55 = arith.constant dense<0.000000e+00> : vector<8x256xf32>
      %139 = tpu.matmul %129, %138, %cst_55 {dimension_numbers = #tpu.dot_dimension_numbers<[1], [0], [0], [1], [0, 0, 1, 1], [], []>} : vector<8x4xf32>, vector<4x256xf32>, vector<8x256xf32> -> vector<8x256xf32>
      %140 = vector.broadcast %126 : vector<8x1xf32> to vector<8x256xf32>
      %141 = arith.addf %139, %140 : vector<8x256xf32>
      %142 = vector.broadcast %1 : vector<1x256xf32> to vector<8x256xf32>
      %143 = arith.mulf %133, %142 : vector<8x256xf32>
      %cst_56 = arith.constant dense<0.000000e+00> : vector<8xf32>
      %144 = vector.multi_reduction <add>, %143, %cst_56 [1] : vector<8x256xf32> to vector<8xf32>
      %145 = vector.shape_cast %144 : vector<8xf32> to vector<8x1xf32>
      %146 = vector.broadcast %2 : vector<1x256xf32> to vector<8x256xf32>
      %147 = arith.mulf %137, %146 : vector<8x256xf32>
      %cst_57 = arith.constant dense<0.000000e+00> : vector<8xf32>
      %148 = vector.multi_reduction <add>, %147, %cst_57 [1] : vector<8x256xf32> to vector<8xf32>
      %149 = vector.shape_cast %148 : vector<8xf32> to vector<8x1xf32>
      %150 = arith.addf %145, %149 : vector<8x1xf32>
      %cst_58 = arith.constant 3.125000e-02 : f32
      %151 = vector.broadcast %cst_58 : f32 to vector<8x1xf32>
      %152 = arith.mulf %150, %151 : vector<8x1xf32>
      %153 = arith.mulf %133, %133 : vector<8x256xf32>
      %154 = vector.broadcast %1 : vector<1x256xf32> to vector<8x256xf32>
      %155 = arith.mulf %153, %154 : vector<8x256xf32>
      %cst_59 = arith.constant dense<0.000000e+00> : vector<8xf32>
      %156 = vector.multi_reduction <add>, %155, %cst_59 [1] : vector<8x256xf32> to vector<8xf32>
      %157 = vector.shape_cast %156 : vector<8xf32> to vector<8x1xf32>
      %158 = arith.mulf %137, %137 : vector<8x256xf32>
      %159 = vector.broadcast %2 : vector<1x256xf32> to vector<8x256xf32>
      %160 = arith.mulf %158, %159 : vector<8x256xf32>
      %cst_60 = arith.constant dense<0.000000e+00> : vector<8xf32>
      %161 = vector.multi_reduction <add>, %160, %cst_60 [1] : vector<8x256xf32> to vector<8xf32>
      %162 = vector.shape_cast %161 : vector<8xf32> to vector<8x1xf32>
      %163 = arith.addf %157, %162 : vector<8x1xf32>
      %cst_61 = arith.constant 3.125000e-02 : f32
      %164 = vector.broadcast %cst_61 : f32 to vector<8x1xf32>
      %165 = arith.mulf %163, %164 : vector<8x1xf32>
      %166 = arith.mulf %152, %152 : vector<8x1xf32>
      %167 = arith.subf %165, %166 : vector<8x1xf32>
      %cst_62 = arith.constant 0.000000e+00 : f32
      %168 = vector.broadcast %cst_62 : f32 to vector<8x1xf32>
      %169 = arith.maximumf %167, %168 : vector<8x1xf32>
      %cst_63 = arith.constant 9.99999974E-6 : f32
      %170 = vector.broadcast %cst_63 : f32 to vector<8x1xf32>
      %171 = arith.addf %169, %170 : vector<8x1xf32>
      %172 = math.rsqrt %171 : vector<8x1xf32>
      %173 = vector.broadcast %152 : vector<8x1xf32> to vector<8x256xf32>
      %174 = arith.subf %141, %173 : vector<8x256xf32>
      %175 = vector.broadcast %172 : vector<8x1xf32> to vector<8x256xf32>
      %176 = arith.mulf %174, %175 : vector<8x256xf32>
      %177 = vector.broadcast %127 : vector<8x1xf32> to vector<8x256xf32>
      %178 = arith.mulf %176, %177 : vector<8x256xf32>
      %179 = vector.broadcast %128 : vector<8x1xf32> to vector<8x256xf32>
      %180 = arith.addf %178, %179 : vector<8x256xf32>
      %cst_64 = arith.constant 0.000000e+00 : f32
      %181 = vector.broadcast %cst_64 : f32 to vector<8x256xf32>
      %182 = arith.cmpf oge, %180, %181 : vector<8x256xf32>
      %cst_65 = arith.constant 1.000000e-01 : f32
      %183 = vector.broadcast %cst_65 : f32 to vector<8x256xf32>
      %184 = arith.mulf %183, %180 : vector<8x256xf32>
      %185 = arith.select %182, %180, %184 : vector<8x256xi1>, vector<8x256xf32>
      %186 = vector.broadcast %3 : vector<1x256xf32> to vector<8x256xf32>
      %187 = arith.mulf %185, %186 : vector<8x256xf32>
      %c0_66 = arith.constant 0 : index
      %c0_67 = arith.constant 0 : index
      %188 = vector.load %arg11[%c0_66, %c0_67] : memref<24x256xf32, #tpu.memory_space<vmem>>, vector<8x256xf32>
      tpu.vector_store %arg11[%c0_66, %c0_67], %187 {strides = array<i32>} : memref<24x256xf32, #tpu.memory_space<vmem>>, vector<8x256xf32>,
      %189 = vector.broadcast %152 : vector<8x1xf32> to vector<8x256xf32>
      %190 = arith.subf %133, %189 : vector<8x256xf32>
      %191 = vector.broadcast %172 : vector<8x1xf32> to vector<8x256xf32>
      %192 = arith.mulf %190, %191 : vector<8x256xf32>
      %193 = vector.broadcast %127 : vector<8x1xf32> to vector<8x256xf32>
      %194 = arith.mulf %192, %193 : vector<8x256xf32>
      %195 = vector.broadcast %128 : vector<8x1xf32> to vector<8x256xf32>
      %196 = arith.addf %194, %195 : vector<8x256xf32>
      %cst_68 = arith.constant 0.000000e+00 : f32
      %197 = vector.broadcast %cst_68 : f32 to vector<8x256xf32>
      %198 = arith.cmpf oge, %196, %197 : vector<8x256xf32>
      %cst_69 = arith.constant 1.000000e-01 : f32
      %199 = vector.broadcast %cst_69 : f32 to vector<8x256xf32>
      %200 = arith.mulf %199, %196 : vector<8x256xf32>
      %201 = arith.select %198, %196, %200 : vector<8x256xi1>, vector<8x256xf32>
      %202 = vector.broadcast %1 : vector<1x256xf32> to vector<8x256xf32>
      %203 = arith.mulf %201, %202 : vector<8x256xf32>
      %c8 = arith.constant 8 : index
      %c0_70 = arith.constant 0 : index
      %204 = vector.load %arg11[%c8, %c0_70] : memref<24x256xf32, #tpu.memory_space<vmem>>, vector<8x256xf32>
      tpu.vector_store %arg11[%c8, %c0_70], %203 {strides = array<i32>} : memref<24x256xf32, #tpu.memory_space<vmem>>, vector<8x256xf32>,
      %205 = vector.broadcast %152 : vector<8x1xf32> to vector<8x256xf32>
      %206 = arith.subf %137, %205 : vector<8x256xf32>
      %207 = vector.broadcast %172 : vector<8x1xf32> to vector<8x256xf32>
      %208 = arith.mulf %206, %207 : vector<8x256xf32>
      %209 = vector.broadcast %127 : vector<8x1xf32> to vector<8x256xf32>
      %210 = arith.mulf %208, %209 : vector<8x256xf32>
      %211 = vector.broadcast %128 : vector<8x1xf32> to vector<8x256xf32>
      %212 = arith.addf %210, %211 : vector<8x256xf32>
      %cst_71 = arith.constant 0.000000e+00 : f32
      %213 = vector.broadcast %cst_71 : f32 to vector<8x256xf32>
      %214 = arith.cmpf oge, %212, %213 : vector<8x256xf32>
      %cst_72 = arith.constant 1.000000e-01 : f32
      %215 = vector.broadcast %cst_72 : f32 to vector<8x256xf32>
      %216 = arith.mulf %215, %212 : vector<8x256xf32>
      %217 = arith.select %214, %212, %216 : vector<8x256xi1>, vector<8x256xf32>
      %218 = vector.broadcast %2 : vector<1x256xf32> to vector<8x256xf32>
      %219 = arith.mulf %217, %218 : vector<8x256xf32>
      %c16 = arith.constant 16 : index
      %c0_73 = arith.constant 0 : index
      %220 = vector.load %arg11[%c16, %c0_73] : memref<24x256xf32, #tpu.memory_space<vmem>>, vector<8x256xf32>
      tpu.vector_store %arg11[%c16, %c0_73], %219 {strides = array<i32>} : memref<24x256xf32, #tpu.memory_space<vmem>>, vector<8x256xf32>,
    } else {
    }
    %c0_2 = arith.constant 0 : index
    %c0_3 = arith.constant 0 : index
    %7 = vector.load %arg9[%c0_2, %c0_3] : memref<8x8xf32, #tpu.memory_space<vmem>>, vector<8x8xf32>
    %8 = vector.extract_strided_slice %7 {offsets = [0, 0], sizes = [8, 1], strides = [1, 1]} : vector<8x8xf32> to vector<8x1xf32>
    %9 = vector.extract_strided_slice %7 {offsets = [0, 1], sizes = [8, 1], strides = [1, 1]} : vector<8x8xf32> to vector<8x1xf32>
    %10 = vector.extract_strided_slice %7 {offsets = [0, 2], sizes = [8, 1], strides = [1, 1]} : vector<8x8xf32> to vector<8x1xf32>
    %11 = vector.extract_strided_slice %7 {offsets = [0, 3], sizes = [8, 1], strides = [1, 1]} : vector<8x8xf32> to vector<8x1xf32>
    %12 = vector.extract_strided_slice %7 {offsets = [0, 4], sizes = [8, 1], strides = [1, 1]} : vector<8x8xf32> to vector<8x1xf32>
    %13 = vector.extract_strided_slice %7 {offsets = [0, 5], sizes = [8, 1], strides = [1, 1]} : vector<8x8xf32> to vector<8x1xf32>
    %14 = vector.extract_strided_slice %7 {offsets = [0, 6], sizes = [8, 1], strides = [1, 1]} : vector<8x8xf32> to vector<8x1xf32>
    %15 = vector.extract_strided_slice %7 {offsets = [0, 7], sizes = [8, 1], strides = [1, 1]} : vector<8x8xf32> to vector<8x1xf32>
    %c0_4 = arith.constant 0 : index
    %c0_5 = arith.constant 0 : index
    %16 = vector.load %arg7[%c0_4, %c0_5] : memref<8x24xf32, #tpu.memory_space<vmem>>, vector<8x24xf32>
    %c0_6 = arith.constant 0 : index
    %c0_7 = arith.constant 0 : index
    %17 = vector.load %arg11[%c0_6, %c0_7] : memref<24x256xf32, #tpu.memory_space<vmem>>, vector<24x256xf32>
    %cst = arith.constant dense<0.000000e+00> : vector<8x256xf32>
    %18 = tpu.matmul %16, %17, %cst {dimension_numbers = #tpu.dot_dimension_numbers<[1], [0], [0], [1], [0, 0, 1, 1], [], []>} : vector<8x24xf32>, vector<24x256xf32>, vector<8x256xf32> -> vector<8x256xf32>
    %19 = vector.broadcast %8 : vector<8x1xf32> to vector<8x256xf32>
    %20 = arith.addf %18, %19 : vector<8x256xf32>
    %21 = vector.broadcast %1 : vector<1x256xf32> to vector<8x256xf32>
    %22 = arith.mulf %20, %21 : vector<8x256xf32>
    %cst_8 = arith.constant dense<0.000000e+00> : vector<8xf32>
    %23 = vector.multi_reduction <add>, %22, %cst_8 [1] : vector<8x256xf32> to vector<8xf32>
    %24 = vector.shape_cast %23 : vector<8xf32> to vector<8x1xf32>
    %cst_9 = arith.constant 6.250000e-02 : f32
    %25 = vector.broadcast %cst_9 : f32 to vector<8x1xf32>
    %26 = arith.mulf %24, %25 : vector<8x1xf32>
    %27 = arith.mulf %22, %20 : vector<8x256xf32>
    %cst_10 = arith.constant dense<0.000000e+00> : vector<8xf32>
    %28 = vector.multi_reduction <add>, %27, %cst_10 [1] : vector<8x256xf32> to vector<8xf32>
    %29 = vector.shape_cast %28 : vector<8xf32> to vector<8x1xf32>
    %cst_11 = arith.constant 6.250000e-02 : f32
    %30 = vector.broadcast %cst_11 : f32 to vector<8x1xf32>
    %31 = arith.mulf %29, %30 : vector<8x1xf32>
    %32 = arith.mulf %26, %26 : vector<8x1xf32>
    %33 = arith.subf %31, %32 : vector<8x1xf32>
    %cst_12 = arith.constant 0.000000e+00 : f32
    %34 = vector.broadcast %cst_12 : f32 to vector<8x1xf32>
    %35 = arith.maximumf %33, %34 : vector<8x1xf32>
    %36 = vector.broadcast %26 : vector<8x1xf32> to vector<8x256xf32>
    %37 = arith.subf %20, %36 : vector<8x256xf32>
    %cst_13 = arith.constant 9.99999974E-6 : f32
    %38 = vector.broadcast %cst_13 : f32 to vector<8x1xf32>
    %39 = arith.addf %35, %38 : vector<8x1xf32>
    %40 = math.rsqrt %39 : vector<8x1xf32>
    %41 = vector.broadcast %40 : vector<8x1xf32> to vector<8x256xf32>
    %42 = arith.mulf %37, %41 : vector<8x256xf32>
    %43 = vector.broadcast %9 : vector<8x1xf32> to vector<8x256xf32>
    %44 = arith.mulf %42, %43 : vector<8x256xf32>
    %45 = vector.broadcast %10 : vector<8x1xf32> to vector<8x256xf32>
    %46 = arith.addf %44, %45 : vector<8x256xf32>
    %cst_14 = arith.constant 0.000000e+00 : f32
    %47 = vector.broadcast %cst_14 : f32 to vector<8x256xf32>
    %48 = arith.cmpf oge, %46, %47 : vector<8x256xf32>
    %cst_15 = arith.constant 1.000000e-01 : f32
    %49 = vector.broadcast %cst_15 : f32 to vector<8x256xf32>
    %50 = arith.mulf %49, %46 : vector<8x256xf32>
    %51 = arith.select %48, %46, %50 : vector<8x256xi1>, vector<8x256xf32>
    %c0_16 = arith.constant 0 : index
    %c0_17 = arith.constant 0 : index
    %52 = vector.load %arg8[%c0_16, %c0_17] : memref<8x12xf32, #tpu.memory_space<vmem>>, vector<8x12xf32>
    %53 = vector.extract_strided_slice %52 {offsets = [0, 0], sizes = [8, 4], strides = [1, 1]} : vector<8x12xf32> to vector<8x4xf32>
    %c0_18 = arith.constant 0 : index
    %c0_19 = arith.constant 0 : index
    %54 = vector.load %arg4[%c0_18, %c0_19] : memref<4x256xf32, #tpu.memory_space<vmem>>, vector<4x256xf32>
    %cst_20 = arith.constant dense<0.000000e+00> : vector<8x256xf32>
    %55 = tpu.matmul %53, %54, %cst_20 {dimension_numbers = #tpu.dot_dimension_numbers<[1], [0], [0], [1], [0, 0, 1, 1], [], []>} : vector<8x4xf32>, vector<4x256xf32>, vector<8x256xf32> -> vector<8x256xf32>
    %56 = vector.extract_strided_slice %52 {offsets = [0, 4], sizes = [8, 4], strides = [1, 1]} : vector<8x12xf32> to vector<8x4xf32>
    %c0_21 = arith.constant 0 : index
    %c0_22 = arith.constant 0 : index
    %57 = vector.load %arg2[%c0_21, %c0_22] : memref<4x256xf32, #tpu.memory_space<vmem>>, vector<4x256xf32>
    %cst_23 = arith.constant dense<0.000000e+00> : vector<8x256xf32>
    %58 = tpu.matmul %56, %57, %cst_23 {dimension_numbers = #tpu.dot_dimension_numbers<[1], [0], [0], [1], [0, 0, 1, 1], [], []>} : vector<8x4xf32>, vector<4x256xf32>, vector<8x256xf32> -> vector<8x256xf32>
    %59 = arith.addf %55, %58 : vector<8x256xf32>
    %60 = vector.extract_strided_slice %52 {offsets = [0, 8], sizes = [8, 4], strides = [1, 1]} : vector<8x12xf32> to vector<8x4xf32>
    %c0_24 = arith.constant 0 : index
    %c0_25 = arith.constant 0 : index
    %61 = vector.load %arg3[%c0_24, %c0_25] : memref<4x256xf32, #tpu.memory_space<vmem>>, vector<4x256xf32>
    %cst_26 = arith.constant dense<0.000000e+00> : vector<8x256xf32>
    %62 = tpu.matmul %60, %61, %cst_26 {dimension_numbers = #tpu.dot_dimension_numbers<[1], [0], [0], [1], [0, 0, 1, 1], [], []>} : vector<8x4xf32>, vector<4x256xf32>, vector<8x256xf32> -> vector<8x256xf32>
    %63 = arith.addf %59, %62 : vector<8x256xf32>
    %64 = vector.broadcast %11 : vector<8x1xf32> to vector<8x256xf32>
    %65 = arith.addf %63, %64 : vector<8x256xf32>
    %66 = vector.broadcast %1 : vector<1x256xf32> to vector<8x256xf32>
    %67 = arith.mulf %65, %66 : vector<8x256xf32>
    %cst_27 = arith.constant dense<0.000000e+00> : vector<8xf32>
    %68 = vector.multi_reduction <add>, %67, %cst_27 [1] : vector<8x256xf32> to vector<8xf32>
    %69 = vector.shape_cast %68 : vector<8xf32> to vector<8x1xf32>
    %cst_28 = arith.constant 6.250000e-02 : f32
    %70 = vector.broadcast %cst_28 : f32 to vector<8x1xf32>
    %71 = arith.mulf %69, %70 : vector<8x1xf32>
    %72 = arith.mulf %67, %65 : vector<8x256xf32>
    %cst_29 = arith.constant dense<0.000000e+00> : vector<8xf32>
    %73 = vector.multi_reduction <add>, %72, %cst_29 [1] : vector<8x256xf32> to vector<8xf32>
    %74 = vector.shape_cast %73 : vector<8xf32> to vector<8x1xf32>
    %cst_30 = arith.constant 6.250000e-02 : f32
    %75 = vector.broadcast %cst_30 : f32 to vector<8x1xf32>
    %76 = arith.mulf %74, %75 : vector<8x1xf32>
    %77 = arith.mulf %71, %71 : vector<8x1xf32>
    %78 = arith.subf %76, %77 : vector<8x1xf32>
    %cst_31 = arith.constant 0.000000e+00 : f32
    %79 = vector.broadcast %cst_31 : f32 to vector<8x1xf32>
    %80 = arith.maximumf %78, %79 : vector<8x1xf32>
    %81 = vector.broadcast %71 : vector<8x1xf32> to vector<8x256xf32>
    %82 = arith.subf %65, %81 : vector<8x256xf32>
    %cst_32 = arith.constant 9.99999974E-6 : f32
    %83 = vector.broadcast %cst_32 : f32 to vector<8x1xf32>
    %84 = arith.addf %80, %83 : vector<8x1xf32>
    %85 = math.rsqrt %84 : vector<8x1xf32>
    %86 = vector.broadcast %85 : vector<8x1xf32> to vector<8x256xf32>
    %87 = arith.mulf %82, %86 : vector<8x256xf32>
    %88 = vector.broadcast %12 : vector<8x1xf32> to vector<8x256xf32>
    %89 = arith.mulf %87, %88 : vector<8x256xf32>
    %90 = vector.broadcast %13 : vector<8x1xf32> to vector<8x256xf32>
    %91 = arith.addf %89, %90 : vector<8x256xf32>
    %92 = arith.mulf %51, %91 : vector<8x256xf32>
    %93 = vector.broadcast %1 : vector<1x256xf32> to vector<8x256xf32>
    %94 = arith.mulf %92, %93 : vector<8x256xf32>
    %cst_33 = arith.constant dense<0.000000e+00> : vector<8xf32>
    %95 = vector.multi_reduction <add>, %94, %cst_33 [1] : vector<8x256xf32> to vector<8xf32>
    %96 = vector.shape_cast %95 : vector<8xf32> to vector<8x1xf32>
    %cst_34 = arith.constant 6.250000e-02 : f32
    %97 = vector.broadcast %cst_34 : f32 to vector<8x1xf32>
    %98 = arith.mulf %96, %97 : vector<8x1xf32>
    %99 = arith.mulf %94, %92 : vector<8x256xf32>
    %cst_35 = arith.constant dense<0.000000e+00> : vector<8xf32>
    %100 = vector.multi_reduction <add>, %99, %cst_35 [1] : vector<8x256xf32> to vector<8xf32>
    %101 = vector.shape_cast %100 : vector<8xf32> to vector<8x1xf32>
    %cst_36 = arith.constant 6.250000e-02 : f32
    %102 = vector.broadcast %cst_36 : f32 to vector<8x1xf32>
    %103 = arith.mulf %101, %102 : vector<8x1xf32>
    %104 = arith.mulf %98, %98 : vector<8x1xf32>
    %105 = arith.subf %103, %104 : vector<8x1xf32>
    %cst_37 = arith.constant 0.000000e+00 : f32
    %106 = vector.broadcast %cst_37 : f32 to vector<8x1xf32>
    %107 = arith.maximumf %105, %106 : vector<8x1xf32>
    %108 = vector.broadcast %98 : vector<8x1xf32> to vector<8x256xf32>
    %109 = arith.subf %92, %108 : vector<8x256xf32>
    %cst_38 = arith.constant 9.99999974E-6 : f32
    %110 = vector.broadcast %cst_38 : f32 to vector<8x1xf32>
    %111 = arith.addf %107, %110 : vector<8x1xf32>
    %112 = math.rsqrt %111 : vector<8x1xf32>
    %113 = vector.broadcast %112 : vector<8x1xf32> to vector<8x256xf32>
    %114 = arith.mulf %109, %113 : vector<8x256xf32>
    %115 = vector.broadcast %14 : vector<8x1xf32> to vector<8x256xf32>
    %116 = arith.mulf %114, %115 : vector<8x256xf32>
    %117 = vector.broadcast %15 : vector<8x1xf32> to vector<8x256xf32>
    %118 = arith.addf %116, %117 : vector<8x256xf32>
    %cst_39 = arith.constant 0.000000e+00 : f32
    %119 = vector.broadcast %cst_39 : f32 to vector<8x256xf32>
    %120 = arith.cmpf oge, %118, %119 : vector<8x256xf32>
    %cst_40 = arith.constant 1.000000e-01 : f32
    %121 = vector.broadcast %cst_40 : f32 to vector<8x256xf32>
    %122 = arith.mulf %121, %118 : vector<8x256xf32>
    %123 = arith.select %120, %118, %122 : vector<8x256xi1>, vector<8x256xf32>
    %c0_41 = arith.constant 0 : index
    %c0_42 = arith.constant 0 : index
    %124 = vector.load %arg10[%c0_41, %c0_42] : memref<8x256xf32, #tpu.memory_space<vmem>>, vector<8x256xf32>
    tpu.vector_store %arg10[%c0_41, %c0_42], %123 {strides = array<i32>} : memref<8x256xf32, #tpu.memory_space<vmem>>, vector<8x256xf32>,
    return
  }
  func.func @transform_0(%arg0: i32) -> (i32, i32) {
    %c0_i32 = arith.constant 0 : i32
    %c0_i32_0 = arith.constant 0 : i32
    %c0_i32_1 = arith.constant 0 : i32
    return %c0_i32, %c0_i32_0 : i32, i32
  }
  func.func @transform_1(%arg0: i32) -> (i32, i32) {
    %c0_i32 = arith.constant 0 : i32
    %c0_i32_0 = arith.constant 0 : i32
    %c0_i32_1 = arith.constant 0 : i32
    return %c0_i32, %c0_i32_0 : i32, i32
  }
  func.func @transform_2(%arg0: i32) -> (i32, i32) {
    %c0_i32 = arith.constant 0 : i32
    %c0_i32_0 = arith.constant 0 : i32
    %c0_i32_1 = arith.constant 0 : i32
    return %c0_i32, %c0_i32_0 : i32, i32
  }
  func.func @transform_3(%arg0: i32) -> (i32, i32) {
    %c0_i32 = arith.constant 0 : i32
    %c0_i32_0 = arith.constant 0 : i32
    %c0_i32_1 = arith.constant 0 : i32
    return %c0_i32, %c0_i32_0 : i32, i32
  }
  func.func @transform_4(%arg0: i32) -> (i32, i32) {
    %c0_i32 = arith.constant 0 : i32
    %c0_i32_0 = arith.constant 0 : i32
    %c0_i32_1 = arith.constant 0 : i32
    return %c0_i32, %c0_i32_0 : i32, i32
  }
  func.func @transform_5(%arg0: i32) -> (i32, i32) {
    %c0_i32 = arith.constant 0 : i32
    %c0_i32_0 = arith.constant 0 : i32
    %c0_i32_1 = arith.constant 0 : i32
    return %c0_i32, %c0_i32_0 : i32, i32
  }
  func.func @transform_6(%arg0: i32) -> (i32, i32) {
    %c0_i32 = arith.constant 0 : i32
    %c0_i32_0 = arith.constant 0 : i32
    return %arg0, %c0_i32 : i32, i32
  }
  func.func @transform_7(%arg0: i32) -> (i32, i32) {
    %c0_i32 = arith.constant 0 : i32
    %c0_i32_0 = arith.constant 0 : i32
    return %arg0, %c0_i32 : i32, i32
  }
  func.func @transform_8(%arg0: i32) -> (i32, i32) {
    %c0_i32 = arith.constant 0 : i32
    %c0_i32_0 = arith.constant 0 : i32
    return %arg0, %c0_i32 : i32, i32
  }
  func.func @transform_9(%arg0: i32) -> (i32, i32) {
    %c0_i32 = arith.constant 0 : i32
    %c0_i32_0 = arith.constant 0 : i32
    return %arg0, %c0_i32 : i32, i32
  }
}

</mosaic_0001>

<llo_original>
// kernel: tpu_custom_call.1
$region0: #{tpu_custom_call.1}
  #allocation0 [shape = 'u32[]', space=smem, size = 0x4, offset = 0x4, fixed_abs, tag = 'smem constant byte address 0x4 - core index']
  #allocation1 [shape = 'u32[144,128]{1,0:T(1,128)}', space=vmem, size = 0x12000, scoped, tag = 'internal scratch']
  #allocation2 [shape = 'f32[24,256]{1,0:T(8,128)}', space=vmem, size = 0x6000, scoped, tag = 'scratch operand']
  %s0 = inlined_call_operand.vmem [shape: f32[8,256], index: 0, kind: input, shape index: {}]
  %s1 = inlined_call_operand.vmem [shape: f32[4,256], index: 1, kind: input, shape index: {}]
  %s2 = inlined_call_operand.hbm [shape: f32[4,256], index: 2, kind: input, shape index: {}]
  %s3 = inlined_call_operand.vmem [shape: f32[4,256], index: 3, kind: input, shape index: {}]
  %s4 = inlined_call_operand.vmem [shape: f32[8,4], index: 4, kind: input, shape index: {}]
  %s5 = inlined_call_operand.vmem [shape: f32[8,3], index: 5, kind: input, shape index: {}]
  %s6 = inlined_call_operand.vmem [shape: f32[8,24], index: 6, kind: input, shape index: {}]
  %s7 = inlined_call_operand.vmem [shape: f32[8,12], index: 7, kind: input, shape index: {}]
  %s8 = inlined_call_operand.hbm [shape: f32[8,8], index: 8, kind: input, shape index: {}]
  %s9 = inlined_call_operand.hbm [shape: f32[8,256], index: 9, kind: output, shape index: {}]
  %s10 = sld [smem:[#allocation0]]
  $region58: #{tpu_custom_call.1} parent=0
    _
  %s12 = ssub.s32 1, %s10
  %s13 = scalar_select 0, %s12, %s10
  $region1: #{tpu_custom_call.1} parent=0
    #allocation3 [shape = 'u8[4096]{0}', space=vmem, size = 0x1000, scoped, tag = 'input window, operand 2, single buffered']
    #allocation4 [shape = 's32[1]{0}', space=sflag, size = 0x4, scoped, tag = 'scoped memory for tpu_custom_call.1']
    #allocation5 [shape = 's32[1]{0}', space=sflag, size = 0x4, scoped, tag = 'scoped memory for tpu_custom_call.1']
    #allocation6 [shape = 'u8[4096]{0}', space=vmem, size = 0x1000, scoped, tag = 'input window, operand 8, single buffered']
    #allocation7 [shape = 's32[1]{0}', space=sflag, size = 0x4, scoped, tag = 'scoped memory for tpu_custom_call.1']
    #allocation8 [shape = 'u8[8192]{0}', space=vmem, size = 0x2000, scoped, tag = 'output window, operand 0, single buffered']
    %14 = vsyncpa [#allocation4], 0
    %15 = vsyncpa [#allocation7], 0
    %16 = vsyncpa [#allocation5], 0
    // Predicated region
    $region2: #{tpu_custom_call.1} parent=1 // pred_check
      _
    $region3: #{tpu_custom_call.1} parent=1 // pred_check_branch
      %18 = sbr.rel (0) target = $region5
    $region4: #{tpu_custom_call.1} parent=1 // pred_region
      _
    $region5: #{tpu_custom_call.1} parent=1 // pred_fallthru
      _
    // Predicated region
    $region6: #{tpu_custom_call.1} parent=1 // pred_check
      _
    $region7: #{tpu_custom_call.1} parent=1 // pred_check_branch
      %20 = sbr.rel (0) target = $region9
    $region8: #{tpu_custom_call.1} parent=1 // pred_region
      _
    $region9: #{tpu_custom_call.1} parent=1 // pred_fallthru
      _
    // Predicated region
    $region10: #{tpu_custom_call.1} parent=1 // pred_check
      _
    $region11: #{tpu_custom_call.1} parent=1 // pred_check_branch
      %22 = sbr.rel (0) target = $region13
    $region12: #{tpu_custom_call.1} parent=1 // pred_region
      %s24 = ssub.s32 128, 128
      %25 = vsyncadd [#allocation4], %s24
      %s27 = sshll.u32 [#allocation3], 4
      %s28 = int_to_ptr.vmem [resolvable:$true] %s27
      %30 = dma.hbm_to_vmem [thread:$0]  %s2, 128, %s28, [#allocation4]
    $region13: #{tpu_custom_call.1} parent=1 // pred_fallthru
      _
    // Predicated region
    $region14: #{tpu_custom_call.1} parent=1 // pred_check
      _
    $region15: #{tpu_custom_call.1} parent=1 // pred_check_branch
      %32 = sbr.rel (0) target = $region17
    $region16: #{tpu_custom_call.1} parent=1 // pred_region
      _
    $region17: #{tpu_custom_call.1} parent=1 // pred_fallthru
      _
    // Predicated region
    $region18: #{tpu_custom_call.1} parent=1 // pred_check
      _
    $region19: #{tpu_custom_call.1} parent=1 // pred_check_branch
      %34 = sbr.rel (0) target = $region21
    $region20: #{tpu_custom_call.1} parent=1 // pred_region
      _
    $region21: #{tpu_custom_call.1} parent=1 // pred_fallthru
      _
    // Predicated region
    $region22: #{tpu_custom_call.1} parent=1 // pred_check
      _
    $region23: #{tpu_custom_call.1} parent=1 // pred_check_branch
      %36 = sbr.rel (0) target = $region25
    $region24: #{tpu_custom_call.1} parent=1 // pred_region
      _
    $region25: #{tpu_custom_call.1} parent=1 // pred_fallthru
      _
    // Predicated region
    $region26: #{tpu_custom_call.1} parent=1 // pred_check
      _
    $region27: #{tpu_custom_call.1} parent=1 // pred_check_branch
      %38 = sbr.rel (0) target = $region29
    $region28: #{tpu_custom_call.1} parent=1 // pred_region
      _
    $region29: #{tpu_custom_call.1} parent=1 // pred_fallthru
      _
    // Predicated region
    $region30: #{tpu_custom_call.1} parent=1 // pred_check
      _
    $region31: #{tpu_custom_call.1} parent=1 // pred_check_branch
      %40 = sbr.rel (0) target = $region33
    $region32: #{tpu_custom_call.1} parent=1 // pred_region
      _
    $region33: #{tpu_custom_call.1} parent=1 // pred_fallthru
      _
    // Predicated region
    $region34: #{tpu_custom_call.1} parent=1 // pred_check
      _
    $region35: #{tpu_custom_call.1} parent=1 // pred_check_branch
      %42 = sbr.rel (0) target = $region37
    $region36: #{tpu_custom_call.1} parent=1 // pred_region
      %s44 = ssub.s32 128, 128
      %45 = vsyncadd [#allocation7], %s44
      %s47 = sshll.u32 [#allocation6], 4
      %s48 = int_to_ptr.vmem [resolvable:$true] %s47
      %50 = dma.hbm_to_vmem [thread:$0]  %s8, 128, %s48, [#allocation7]
    $region37: #{tpu_custom_call.1} parent=1 // pred_fallthru
      _
    // Predicated region
    $region38: #{tpu_custom_call.1} parent=1 // pred_check
      _
    $region39: #{tpu_custom_call.1} parent=1 // pred_check_branch
      %52 = sbr.rel (0) target = $region41
    $region40: #{tpu_custom_call.1} parent=1 // pred_region
      %53 = dma.done [#allocation4], 128
    $region41: #{tpu_custom_call.1} parent=1 // pred_fallthru
      _
    // Predicated region
    $region42: #{tpu_custom_call.1} parent=1 // pred_check
      _
    $region43: #{tpu_custom_call.1} parent=1 // pred_check_branch
      %55 = sbr.rel (0) target = $region45
    $region44: #{tpu_custom_call.1} parent=1 // pred_region
      %56 = dma.done [#allocation7], 128
    $region45: #{tpu_custom_call.1} parent=1 // pred_fallthru
      _
    %v57 = vld [vmem:[%s0] sm:$0xff]
    %v58 = vld [vmem:[%s0 + $0x8] sm:$0xff]
    %p59 = scmp.eq.s32.totalorder 0, 0
    // Predicated region
    $region46: #{tpu_custom_call.1} parent=1 // pred_check
      %p60 = pneg %p59
    $region47: #{tpu_custom_call.1} parent=1 // pred_check_branch
      %62 = sbr.rel (%p60) target = $region49
    $region48: #{tpu_custom_call.1} parent=1 // pred_region
      %v63 = vld [vmem:[%s5] sm:$0xff]
      %v64 = vld [vmem:[%s4] sm:$0xff]
      %v65 = vld [vmem:[%s1] sm:$0xff]
      %67 = vset.pattern.permute.xlu0 0
      %68 = vperm.xlu0 %67, %v63
      %v69 = vpop.permute.xlu0 %68
      %v72 = vcombine.high %v65, %v65
      %vm73 = vcmask 31744
      %v75 = vsel %vm73, %v64, 0
      %vm77 = vcmask 1043456
      %v78 = vsel %vm77, %v65, 0
      %v80 = vsel %vm77, %v72, 0
      %82 = vmatprep.subr.mxu0 %v80
      %83 = vmatpush1.msra.mxu0 %v78
      %84 = vmatprep.subr.mxu0 0.0
      %85 = vmatpush1.msra.mxu0 0.0
      %86 = vmatprep.subr.mxu0 0.0
      %87 = vmatpush1.msra.mxu0 0.0
      %88 = vmatprep.subr.mxu0 0.0
      %89 = vmatpush1.msra.mxu0 0.0
      %90 = vmatprep.subr.mxu0 0.0
      %91 = vmatpush1.msra.mxu0 0.0
      %92 = vmatprep.subr.mxu0 0.0
      %93 = vmatpush1.msra.mxu0 0.0
      %94 = vmatprep.subr.mxu0 0.0
      %95 = vmatpush1.msra.mxu0 0.0
      %96 = vmatprep.subr.mxu0 0.0
      %97 = vmatpush1.msra.mxu0 0.0
      %98 = vmatprep.subr.mxu0 0.0
      %99 = vmatpush1.msra.mxu0 0.0
      %100 = vmatprep.subr.mxu0 0.0
      %101 = vmatpush1.msra.mxu0 0.0
      %102 = vmatprep.subr.mxu0 0.0
      %103 = vmatpush1.msra.mxu0 0.0
      %104 = vmatprep.subr.mxu0 0.0
      %105 = vmatpush1.msra.mxu0 0.0
      %106 = vmatprep.subr.mxu0 0.0
      %107 = vmatpush1.msra.mxu0 0.0
      %108 = vmatprep.subr.mxu0 0.0
      %109 = vmatpush1.msra.mxu0 0.0
      %110 = vmatprep.subr.mxu0 0.0
      %111 = vmatpush1.msra.mxu0 0.0
      %112 = vmatprep.subr.mxu0 0.0
      %113 = vmatpush1.msra.mxu0 0.0
      %114 = vmatprep.subr.mxu0 0.0
      %115 = vmatpush1.msra.mxu0 0.0
      %116 = vmatprep.subr.mxu0 0.0
      %117 = vmatpush1.msra.mxu0 0.0
      %118 = vmatprep.subr.mxu0 0.0
      %119 = vmatpush1.msra.mxu0 0.0
      %120 = vmatprep.subr.mxu0 0.0
      %121 = vmatpush1.msra.mxu0 0.0
      %122 = vmatprep.subr.mxu0 0.0
      %123 = vmatpush1.msra.mxu0 0.0
      %124 = vmatprep.subr.mxu0 0.0
      %125 = vmatpush1.msra.mxu0 0.0
      %126 = vmatprep.subr.mxu0 0.0
      %127 = vmatpush1.msra.mxu0 0.0
      %128 = vmatprep.subr.mxu0 0.0
      %129 = vmatpush1.msra.mxu0 0.0
      %130 = vmatprep.subr.mxu0 0.0
      %131 = vmatpush1.msra.mxu0 0.0
      %132 = vmatprep.subr.mxu0 0.0
      %133 = vmatpush1.msra.mxu0 0.0
      %134 = vmatprep.subr.mxu0 0.0
      %135 = vmatpush1.msra.mxu0 0.0
      %136 = vmatprep.subr.mxu0 0.0
      %137 = vmatpush1.msra.mxu0 0.0
      %138 = vmatprep.subr.mxu0 0.0
      %139 = vmatpush1.msra.mxu0 0.0
      %140 = vmatprep.subr.mxu0 0.0
      %141 = vmatpush1.msra.mxu0 0.0
      %142 = vmatprep.subr.mxu0 0.0
      %143 = vmatpush1.msra.mxu0 0.0
      %144 = vmatprep.subr.mxu0 0.0
      %145 = vmatpush1.msra.mxu0 0.0
      %146 = vmatprep.mubr.f32.mxu0 0.0
      %147 = vmatmul.mubr.f32.gmra.mrb[0].mxu0 %v75
      %v148 = vpop.f32.mrb[0].mxu0
      %v149 = vadd.f32 %v69, %v148
      %v150 = vpop.f32.mrb[0].mxu0
      %v151 = vadd.f32 %v69, %v150
      %152 = vdwg.mxu0
      %v153 = vld [vmem:[#allocation3] sm:$0xff]
      %v155 = vcombine.high %v153, %v153
      %v156 = vsel %vm77, %v153, 0
      %v158 = vsel %vm77, %v155, 0
      %160 = vmatprep.subr.mxu0 %v158
      %161 = vmatpush1.msra.mxu0 %v156
      %162 = vmatprep.subr.mxu0 0.0
      %163 = vmatpush1.msra.mxu0 0.0
      %164 = vmatprep.subr.mxu0 0.0
      %165 = vmatpush1.msra.mxu0 0.0
      %166 = vmatprep.subr.mxu0 0.0
      %167 = vmatpush1.msra.mxu0 0.0
      %168 = vmatprep.subr.mxu0 0.0
      %169 = vmatpush1.msra.mxu0 0.0
      %170 = vmatprep.subr.mxu0 0.0
      %171 = vmatpush1.msra.mxu0 0.0
      %172 = vmatprep.subr.mxu0 0.0
      %173 = vmatpush1.msra.mxu0 0.0
      %174 = vmatprep.subr.mxu0 0.0
      %175 = vmatpush1.msra.mxu0 0.0
      %176 = vmatprep.subr.mxu0 0.0
      %177 = vmatpush1.msra.mxu0 0.0
      %178 = vmatprep.subr.mxu0 0.0
      %179 = vmatpush1.msra.mxu0 0.0
      %180 = vmatprep.subr.mxu0 0.0
      %181 = vmatpush1.msra.mxu0 0.0
      %182 = vmatprep.subr.mxu0 0.0
      %183 = vmatpush1.msra.mxu0 0.0
      %184 = vmatprep.subr.mxu0 0.0
      %185 = vmatpush1.msra.mxu0 0.0
      %186 = vmatprep.subr.mxu0 0.0
      %187 = vmatpush1.msra.mxu0 0.0
      %188 = vmatprep.subr.mxu0 0.0
      %189 = vmatpush1.msra.mxu0 0.0
      %190 = vmatprep.subr.mxu0 0.0
      %191 = vmatpush1.msra.mxu0 0.0
      %192 = vmatprep.subr.mxu0 0.0
      %193 = vmatpush1.msra.mxu0 0.0
      %194 = vmatprep.subr.mxu0 0.0
      %195 = vmatpush1.msra.mxu0 0.0
      %196 = vmatprep.subr.mxu0 0.0
      %197 = vmatpush1.msra.mxu0 0.0
      %198 = vmatprep.subr.mxu0 0.0
      %199 = vmatpush1.msra.mxu0 0.0
      %200 = vmatprep.subr.mxu0 0.0
      %201 = vmatpush1.msra.mxu0 0.0
      %202 = vmatprep.subr.mxu0 0.0
      %203 = vmatpush1.msra.mxu0 0.0
      %204 = vmatprep.subr.mxu0 0.0
      %205 = vmatpush1.msra.mxu0 0.0
      %206 = vmatprep.subr.mxu0 0.0
      %207 = vmatpush1.msra.mxu0 0.0
      %208 = vmatprep.subr.mxu0 0.0
      %209 = vmatpush1.msra.mxu0 0.0
      %210 = vmatprep.subr.mxu0 0.0
      %211 = vmatpush1.msra.mxu0 0.0
      %212 = vmatprep.subr.mxu0 0.0
      %213 = vmatpush1.msra.mxu0 0.0
      %214 = vmatprep.subr.mxu0 0.0
      %215 = vmatpush1.msra.mxu0 0.0
      %216 = vmatprep.subr.mxu0 0.0
      %217 = vmatpush1.msra.mxu0 0.0
      %218 = vmatprep.subr.mxu0 0.0
      %219 = vmatpush1.msra.mxu0 0.0
      %220 = vmatprep.subr.mxu0 0.0
      %221 = vmatpush1.msra.mxu0 0.0
      %222 = vmatprep.subr.mxu0 0.0
      %223 = vmatpush1.msra.mxu0 0.0
      %224 = vmatprep.mubr.f32.mxu0 0.0
      %225 = vmatmul.mubr.f32.gmra.mrb[0].mxu0 %v75
      %v226 = vpop.f32.mrb[0].mxu0
      %v227 = vadd.f32 %v69, %v226
      %v228 = vpop.f32.mrb[0].mxu0
      %v229 = vadd.f32 %v69, %v228
      %230 = vdwg.mxu0
      %v231 = vld [vmem:[%s3] sm:$0xff]
      %v233 = vcombine.high %v231, %v231
      %v234 = vsel %vm77, %v231, 0
      %v236 = vsel %vm77, %v233, 0
      %238 = vmatprep.subr.mxu0 %v236
      %239 = vmatpush1.msra.mxu0 %v234
      %240 = vmatprep.subr.mxu0 0.0
      %241 = vmatpush1.msra.mxu0 0.0
      %242 = vmatprep.subr.mxu0 0.0
      %243 = vmatpush1.msra.mxu0 0.0
      %244 = vmatprep.subr.mxu0 0.0
      %245 = vmatpush1.msra.mxu0 0.0
      %246 = vmatprep.subr.mxu0 0.0
      %247 = vmatpush1.msra.mxu0 0.0
      %248 = vmatprep.subr.mxu0 0.0
      %249 = vmatpush1.msra.mxu0 0.0
      %250 = vmatprep.subr.mxu0 0.0
      %251 = vmatpush1.msra.mxu0 0.0
      %252 = vmatprep.subr.mxu0 0.0
      %253 = vmatpush1.msra.mxu0 0.0
      %254 = vmatprep.subr.mxu0 0.0
      %255 = vmatpush1.msra.mxu0 0.0
      %256 = vmatprep.subr.mxu0 0.0
      %257 = vmatpush1.msra.mxu0 0.0
      %258 = vmatprep.subr.mxu0 0.0
      %259 = vmatpush1.msra.mxu0 0.0
      %260 = vmatprep.subr.mxu0 0.0
      %261 = vmatpush1.msra.mxu0 0.0
      %262 = vmatprep.subr.mxu0 0.0
      %263 = vmatpush1.msra.mxu0 0.0
      %264 = vmatprep.subr.mxu0 0.0
      %265 = vmatpush1.msra.mxu0 0.0
      %266 = vmatprep.subr.mxu0 0.0
      %267 = vmatpush1.msra.mxu0 0.0
      %268 = vmatprep.subr.mxu0 0.0
      %269 = vmatpush1.msra.mxu0 0.0
      %270 = vmatprep.subr.mxu0 0.0
      %271 = vmatpush1.msra.mxu0 0.0
      %272 = vmatprep.subr.mxu0 0.0
      %273 = vmatpush1.msra.mxu0 0.0
      %274 = vmatprep.subr.mxu0 0.0
      %275 = vmatpush1.msra.mxu0 0.0
      %276 = vmatprep.subr.mxu0 0.0
      %277 = vmatpush1.msra.mxu0 0.0
      %278 = vmatprep.subr.mxu0 0.0
      %279 = vmatpush1.msra.mxu0 0.0
      %280 = vmatprep.subr.mxu0 0.0
      %281 = vmatpush1.msra.mxu0 0.0
      %282 = vmatprep.subr.mxu0 0.0
      %283 = vmatpush1.msra.mxu0 0.0
      %284 = vmatprep.subr.mxu0 0.0
      %285 = vmatpush1.msra.mxu0 0.0
      %286 = vmatprep.subr.mxu0 0.0
      %287 = vmatpush1.msra.mxu0 0.0
      %288 = vmatprep.subr.mxu0 0.0
      %289 = vmatpush1.msra.mxu0 0.0
      %290 = vmatprep.subr.mxu0 0.0
      %291 = vmatpush1.msra.mxu0 0.0
      %292 = vmatprep.subr.mxu0 0.0
      %293 = vmatpush1.msra.mxu0 0.0
      %294 = vmatprep.subr.mxu0 0.0
      %295 = vmatpush1.msra.mxu0 0.0
      %296 = vmatprep.subr.mxu0 0.0
      %297 = vmatpush1.msra.mxu0 0.0
      %298 = vmatprep.subr.mxu0 0.0
      %299 = vmatpush1.msra.mxu0 0.0
      %300 = vmatprep.subr.mxu0 0.0
      %301 = vmatpush1.msra.mxu0 0.0
      %302 = vmatprep.mubr.f32.mxu0 0.0
      %303 = vmatmul.mubr.f32.gmra.mrb[0].mxu0 %v75
      %v304 = vpop.f32.mrb[0].mxu0
      %v305 = vadd.f32 %v69, %v304
      %v306 = vpop.f32.mrb[0].mxu0
      %v307 = vadd.f32 %v69, %v306
      %308 = vdwg.mxu0
      %v309 = vlaneseq
      %v310 = vshrl.u32 %v309, 7
      %v311 = vsub.s32 0, %v310
      %v312 = vrot.slane %v57, %v311
      %v313 = vlaneseq
      %v314 = vshrl.u32 %v313, 7
      %v315 = vsub.s32 0, %v314
      %v316 = vrot.slane %v58, %v315
      %v317 = vmul.f32 %v149, %v312
      %v318 = vmul.f32 %v151, %v316
      %v319 = vadd.f32 %v317, %v318
      %320 = vadd.xlane.f32.xlu0 %v319
      %v321 = vpop.xlane.xlu0 %320
      %v322 = vlaneseq
      %v323 = vshrl.u32 %v322, 7
      %v324 = vsub.s32 1, %v323
      %v325 = vrot.slane %v57, %v324
      %v326 = vlaneseq
      %v327 = vshrl.u32 %v326, 7
      %v328 = vsub.s32 1, %v327
      %v329 = vrot.slane %v58, %v328
      %v330 = vmul.f32 %v227, %v325
      %v331 = vmul.f32 %v229, %v329
      %v332 = vadd.f32 %v330, %v331
      %333 = vadd.xlane.f32.xlu0 %v332
      %v334 = vpop.xlane.xlu0 %333
      %v335 = vadd.f32 %v321, %v334
      %v336 = vmul.f32 %v335, 0.03125
      %v337 = vmul.f32 %v149, %v149
      %v338 = vmul.f32 %v151, %v151
      %v339 = vmul.f32 %v337, %v312
      %v340 = vmul.f32 %v338, %v316
      %v341 = vadd.f32 %v339, %v340
      %342 = vadd.xlane.f32.xlu0 %v341
      %v343 = vpop.xlane.xlu0 %342
      %v344 = vmul.f32 %v227, %v227
      %v345 = vmul.f32 %v229, %v229
      %v346 = vmul.f32 %v344, %v325
      %v347 = vmul.f32 %v345, %v329
      %v348 = vadd.f32 %v346, %v347
      %349 = vadd.xlane.f32.xlu0 %v348
      %v350 = vpop.xlane.xlu0 %349
      %v351 = vadd.f32 %v343, %v350
      %v352 = vmul.f32 %v351, 0.03125
      %v353 = vmul.f32 %v336, %v336
      %v354 = vsub.f32 %v352, %v353
      %v355 = vmax.f32 %v354, 0.0
      %v356 = vadd.f32 %v355, 1e-05
      %v357 = vrsqrt.pop %v356
      %v358 = vsub.f32 %v305, %v336
      %v359 = vsub.f32 %v307, %v336
      %v360 = vmul.f32 %v358, %v357
      %v361 = vmul.f32 %v359, %v357
      %362 = vset.pattern.permute.xlu0 1
      %363 = vperm.xlu0 %362, %v63
      %v364 = vpop.permute.xlu0 %363
      %v366 = vmul.f32 %v360, %v364
      %v367 = vmul.f32 %v361, %v364
      %368 = vset.pattern.permute.xlu0 2
      %369 = vperm.xlu0 %368, %v63
      %v370 = vpop.permute.xlu0 %369
      %v372 = vadd.f32 %v366, %v370
      %v373 = vadd.f32 %v367, %v370
      %vm374 = vcmp.ge.f32.partialorder %v372, 0.0
      %vm375 = vcmp.ge.f32.partialorder %v373, 0.0
      %v376 = vmul.f32 %v372, 0.1
      %v377 = vmul.f32 %v373, 0.1
      %v378 = vsel %vm374, %v372, %v376
      %v379 = vsel %vm375, %v373, %v377
      %v380 = vlaneseq
      %v381 = vshrl.u32 %v380, 7
      %v382 = vsub.s32 2, %v381
      %v383 = vrot.slane %v57, %v382
      %v384 = vlaneseq
      %v385 = vshrl.u32 %v384, 7
      %v386 = vsub.s32 2, %v385
      %v387 = vrot.slane %v58, %v386
      %v388 = vmul.f32 %v378, %v383
      %v389 = vmul.f32 %v379, %v387
      %390 = vst [vmem:[#allocation2] sm:$0xff] %v388
      %391 = vst [vmem:[#allocation2 + $0x8] sm:$0xff] %v389
      %v392 = vsub.f32 %v149, %v336
      %v393 = vsub.f32 %v151, %v336
      %v394 = vmul.f32 %v392, %v357
      %v395 = vmul.f32 %v393, %v357
      %v396 = vmul.f32 %v394, %v364
      %v397 = vmul.f32 %v395, %v364
      %v398 = vadd.f32 %v396, %v370
      %v399 = vadd.f32 %v397, %v370
      %vm400 = vcmp.ge.f32.partialorder %v398, 0.0
      %vm401 = vcmp.ge.f32.partialorder %v399, 0.0
      %v402 = vmul.f32 %v398, 0.1
      %v403 = vmul.f32 %v399, 0.1
      %v404 = vsel %vm400, %v398, %v402
      %v405 = vsel %vm401, %v399, %v403
      %v406 = vmul.f32 %v404, %v312
      %v407 = vmul.f32 %v405, %v316
      %408 = vst [vmem:[#allocation2 + $0x10] sm:$0xff] %v406
      %409 = vst [vmem:[#allocation2 + $0x18] sm:$0xff] %v407
      %v410 = vsub.f32 %v227, %v336
      %v411 = vsub.f32 %v229, %v336
      %v412 = vmul.f32 %v410, %v357
      %v413 = vmul.f32 %v411, %v357
      %v414 = vmul.f32 %v412, %v364
      %v415 = vmul.f32 %v413, %v364
      %v416 = vadd.f32 %v414, %v370
      %v417 = vadd.f32 %v415, %v370
      %vm418 = vcmp.ge.f32.partialorder %v416, 0.0
      %vm419 = vcmp.ge.f32.partialorder %v417, 0.0
      %v420 = vmul.f32 %v416, 0.1
      %v421 = vmul.f32 %v417, 0.1
      %v422 = vsel %vm418, %v416, %v420
      %v423 = vsel %vm419, %v417, %v421
      %v424 = vmul.f32 %v422, %v325
      %v425 = vmul.f32 %v423, %v329
      %426 = vst [vmem:[#allocation2 + $0x20] sm:$0xff] %v424
      %427 = vst [vmem:[#allocation2 + $0x28] sm:$0xff] %v425
    $region49: #{tpu_custom_call.1} parent=1 // pred_fallthru
      _
    %v428 = vld [vmem:[#allocation6] sm:$0xff]
    %v429 = vld [vmem:[%s6] sm:$0xff]
    %v430 = vld [vmem:[#allocation2] sm:$0xff]
    %v431 = vld [vmem:[#allocation2 + $0x8] sm:$0xff]
    %v432 = vld [vmem:[#allocation2 + $0x10] sm:$0xff]
    %v433 = vld [vmem:[#allocation2 + $0x18] sm:$0xff]
    %v434 = vld [vmem:[#allocation2 + $0x20] sm:$0xff]
    %v435 = vld [vmem:[#allocation2 + $0x28] sm:$0xff]
    %437 = vset.pattern.permute.xlu0 0
    %438 = vperm.xlu0 %437, %v428
    %v439 = vpop.permute.xlu0 %438
    %vm441 = vcmask 195584
    %v443 = vsel %vm441, %v429, 0
    %445 = vmatprep.subr.mxu0 %v431
    %446 = vmatpush1.msra.mxu0 %v430
    %447 = vmatprep.subr.mxu0 %v433
    %448 = vmatpush1.msra.mxu0 %v432
    %449 = vmatprep.subr.mxu0 %v435
    %450 = vmatpush1.msra.mxu0 %v434
    %451 = vmatprep.subr.mxu0 0.0
    %452 = vmatpush1.msra.mxu0 0.0
    %453 = vmatprep.subr.mxu0 0.0
    %454 = vmatpush1.msra.mxu0 0.0
    %455 = vmatprep.subr.mxu0 0.0
    %456 = vmatpush1.msra.mxu0 0.0
    %457 = vmatprep.subr.mxu0 0.0
    %458 = vmatpush1.msra.mxu0 0.0
    %459 = vmatprep.subr.mxu0 0.0
    %460 = vmatpush1.msra.mxu0 0.0
    %461 = vmatprep.subr.mxu0 0.0
    %462 = vmatpush1.msra.mxu0 0.0
    %463 = vmatprep.subr.mxu0 0.0
    %464 = vmatpush1.msra.mxu0 0.0
    %465 = vmatprep.subr.mxu0 0.0
    %466 = vmatpush1.msra.mxu0 0.0
    %467 = vmatprep.subr.mxu0 0.0
    %468 = vmatpush1.msra.mxu0 0.0
    %469 = vmatprep.subr.mxu0 0.0
    %470 = vmatpush1.msra.mxu0 0.0
    %471 = vmatprep.subr.mxu0 0.0
    %472 = vmatpush1.msra.mxu0 0.0
    %473 = vmatprep.subr.mxu0 0.0
    %474 = vmatpush1.msra.mxu0 0.0
    %475 = vmatprep.subr.mxu0 0.0
    %476 = vmatpush1.msra.mxu0 0.0
    %477 = vmatprep.subr.mxu0 0.0
    %478 = vmatpush1.msra.mxu0 0.0
    %479 = vmatprep.subr.mxu0 0.0
    %480 = vmatpush1.msra.mxu0 0.0
    %481 = vmatprep.subr.mxu0 0.0
    %482 = vmatpush1.msra.mxu0 0.0
    %483 = vmatprep.subr.mxu0 0.0
    %484 = vmatpush1.msra.mxu0 0.0
    %485 = vmatprep.subr.mxu0 0.0
    %486 = vmatpush1.msra.mxu0 0.0
    %487 = vmatprep.subr.mxu0 0.0
    %488 = vmatpush1.msra.mxu0 0.0
    %489 = vmatprep.subr.mxu0 0.0
    %490 = vmatpush1.msra.mxu0 0.0
    %491 = vmatprep.subr.mxu0 0.0
    %492 = vmatpush1.msra.mxu0 0.0
    %493 = vmatprep.subr.mxu0 0.0
    %494 = vmatpush1.msra.mxu0 0.0
    %495 = vmatprep.subr.mxu0 0.0
    %496 = vmatpush1.msra.mxu0 0.0
    %497 = vmatprep.subr.mxu0 0.0
    %498 = vmatpush1.msra.mxu0 0.0
    %499 = vmatprep.subr.mxu0 0.0
    %500 = vmatpush1.msra.mxu0 0.0
    %501 = vmatprep.subr.mxu0 0.0
    %502 = vmatpush1.msra.mxu0 0.0
    %503 = vmatprep.subr.mxu0 0.0
    %504 = vmatpush1.msra.mxu0 0.0
    %505 = vmatprep.subr.mxu0 0.0
    %506 = vmatpush1.msra.mxu0 0.0
    %507 = vmatprep.subr.mxu0 0.0
    %508 = vmatpush1.msra.mxu0 0.0
    %509 = vmatprep.mubr.f32.mxu0 0.0
    %510 = vmatmul.mubr.f32.gmra.mrb[0].mxu0 %v443
    %v511 = vpop.f32.mrb[0].mxu0
    %v512 = vadd.f32 %v439, %v511
    %v513 = vpop.f32.mrb[0].mxu0
    %v514 = vadd.f32 %v439, %v513
    %515 = vdwg.mxu0
    %v516 = vlaneseq
    %v517 = vshrl.u32 %v516, 7
    %v518 = vsub.s32 0, %v517
    %v519 = vrot.slane %v57, %v518
    %v520 = vlaneseq
    %v521 = vshrl.u32 %v520, 7
    %v522 = vsub.s32 0, %v521
    %v523 = vrot.slane %v58, %v522
    %v524 = vmul.f32 %v512, %v519
    %v525 = vmul.f32 %v514, %v523
    %v526 = vadd.f32 %v524, %v525
    %527 = vadd.xlane.f32.xlu0 %v526
    %v528 = vpop.xlane.xlu0 %527
    %v529 = vmul.f32 %v528, 0.0625
    %v530 = vmul.f32 %v524, %v512
    %v531 = vmul.f32 %v525, %v514
    %v532 = vadd.f32 %v530, %v531
    %533 = vadd.xlane.f32.xlu0 %v532
    %v534 = vpop.xlane.xlu0 %533
    %v535 = vmul.f32 %v534, 0.0625
    %v536 = vmul.f32 %v529, %v529
    %v537 = vsub.f32 %v535, %v536
    %v538 = vmax.f32 %v537, 0.0
    %v539 = vsub.f32 %v512, %v529
    %v540 = vsub.f32 %v514, %v529
    %v541 = vadd.f32 %v538, 1e-05
    %v542 = vrsqrt.pop %v541
    %v543 = vmul.f32 %v539, %v542
    %v544 = vmul.f32 %v540, %v542
    %545 = vset.pattern.permute.xlu0 1
    %546 = vperm.xlu0 %545, %v428
    %v547 = vpop.permute.xlu0 %546
    %v549 = vmul.f32 %v543, %v547
    %v550 = vmul.f32 %v544, %v547
    %551 = vset.pattern.permute.xlu0 2
    %552 = vperm.xlu0 %551, %v428
    %v553 = vpop.permute.xlu0 %552
    %v555 = vadd.f32 %v549, %v553
    %v556 = vadd.f32 %v550, %v553
    %vm557 = vcmp.ge.f32.partialorder %v555, 0.0
    %vm558 = vcmp.ge.f32.partialorder %v556, 0.0
    %v559 = vmul.f32 %v555, 0.1
    %v560 = vmul.f32 %v556, 0.1
    %v561 = vsel %vm557, %v555, %v559
    %v562 = vsel %vm558, %v556, %v560
    %v563 = vld [vmem:[%s7] sm:$0xff]
    %v564 = vld [vmem:[%s3] sm:$0xff]
    %v565 = vld [vmem:[%s1] sm:$0xff]
    %567 = vrot.lane.b32.xlu0 %v563, 124
    %v568 = vpop.permute.xlu0 %567
    %v570 = vcombine.high %v565, %v565
    %vm571 = vcmask 31744
    %v572 = vsel %vm571, %v568, 0
    %vm574 = vcmask 1043456
    %v575 = vsel %vm574, %v565, 0
    %v577 = vsel %vm574, %v570, 0
    %579 = vmatprep.subr.mxu0 %v577
    %580 = vmatpush1.msra.mxu0 %v575
    %581 = vmatprep.subr.mxu0 0.0
    %582 = vmatpush1.msra.mxu0 0.0
    %583 = vmatprep.subr.mxu0 0.0
    %584 = vmatpush1.msra.mxu0 0.0
    %585 = vmatprep.subr.mxu0 0.0
    %586 = vmatpush1.msra.mxu0 0.0
    %587 = vmatprep.subr.mxu0 0.0
    %588 = vmatpush1.msra.mxu0 0.0
    %589 = vmatprep.subr.mxu0 0.0
    %590 = vmatpush1.msra.mxu0 0.0
    %591 = vmatprep.subr.mxu0 0.0
    %592 = vmatpush1.msra.mxu0 0.0
    %593 = vmatprep.subr.mxu0 0.0
    %594 = vmatpush1.msra.mxu0 0.0
    %595 = vmatprep.subr.mxu0 0.0
    %596 = vmatpush1.msra.mxu0 0.0
    %597 = vmatprep.subr.mxu0 0.0
    %598 = vmatpush1.msra.mxu0 0.0
    %599 = vmatprep.subr.mxu0 0.0
    %600 = vmatpush1.msra.mxu0 0.0
    %601 = vmatprep.subr.mxu0 0.0
    %602 = vmatpush1.msra.mxu0 0.0
    %603 = vmatprep.subr.mxu0 0.0
    %604 = vmatpush1.msra.mxu0 0.0
    %605 = vmatprep.subr.mxu0 0.0
    %606 = vmatpush1.msra.mxu0 0.0
    %607 = vmatprep.subr.mxu0 0.0
    %608 = vmatpush1.msra.mxu0 0.0
    %609 = vmatprep.subr.mxu0 0.0
    %610 = vmatpush1.msra.mxu0 0.0
    %611 = vmatprep.subr.mxu0 0.0
    %612 = vmatpush1.msra.mxu0 0.0
    %613 = vmatprep.subr.mxu0 0.0
    %614 = vmatpush1.msra.mxu0 0.0
    %615 = vmatprep.subr.mxu0 0.0
    %616 = vmatpush1.msra.mxu0 0.0
    %617 = vmatprep.subr.mxu0 0.0
    %618 = vmatpush1.msra.mxu0 0.0
    %619 = vmatprep.subr.mxu0 0.0
    %620 = vmatpush1.msra.mxu0 0.0
    %621 = vmatprep.subr.mxu0 0.0
    %622 = vmatpush1.msra.mxu0 0.0
    %623 = vmatprep.subr.mxu0 0.0
    %624 = vmatpush1.msra.mxu0 0.0
    %625 = vmatprep.subr.mxu0 0.0
    %626 = vmatpush1.msra.mxu0 0.0
    %627 = vmatprep.subr.mxu0 0.0
    %628 = vmatpush1.msra.mxu0 0.0
    %629 = vmatprep.subr.mxu0 0.0
    %630 = vmatpush1.msra.mxu0 0.0
    %631 = vmatprep.subr.mxu0 0.0
    %632 = vmatpush1.msra.mxu0 0.0
    %633 = vmatprep.subr.mxu0 0.0
    %634 = vmatpush1.msra.mxu0 0.0
    %635 = vmatprep.subr.mxu0 0.0
    %636 = vmatpush1.msra.mxu0 0.0
    %637 = vmatprep.subr.mxu0 0.0
    %638 = vmatpush1.msra.mxu0 0.0
    %639 = vmatprep.subr.mxu0 0.0
    %640 = vmatpush1.msra.mxu0 0.0
    %641 = vmatprep.subr.mxu0 0.0
    %642 = vmatpush1.msra.mxu0 0.0
    %643 = vmatprep.mubr.f32.mxu0 0.0
    %644 = vmatmul.mubr.f32.gmra.mrb[0].mxu0 %v572
    %v645 = vpop.f32.mrb[0].mxu0
    %v646 = vadd.f32 0.0, %v645
    %v647 = vpop.f32.mrb[0].mxu0
    %v648 = vadd.f32 0.0, %v647
    %649 = vdwg.mxu0
    %v651 = vcombine.high %v564, %v564
    %v652 = vsel %vm571, %v563, 0
    %v654 = vsel %vm574, %v564, 0
    %v656 = vsel %vm574, %v651, 0
    %658 = vmatprep.subr.mxu0 %v656
    %659 = vmatpush1.msra.mxu0 %v654
    %660 = vmatprep.subr.mxu0 0.0
    %661 = vmatpush1.msra.mxu0 0.0
    %662 = vmatprep.subr.mxu0 0.0
    %663 = vmatpush1.msra.mxu0 0.0
    %664 = vmatprep.subr.mxu0 0.0
    %665 = vmatpush1.msra.mxu0 0.0
    %666 = vmatprep.subr.mxu0 0.0
    %667 = vmatpush1.msra.mxu0 0.0
    %668 = vmatprep.subr.mxu0 0.0
    %669 = vmatpush1.msra.mxu0 0.0
    %670 = vmatprep.subr.mxu0 0.0
    %671 = vmatpush1.msra.mxu0 0.0
    %672 = vmatprep.subr.mxu0 0.0
    %673 = vmatpush1.msra.mxu0 0.0
    %674 = vmatprep.subr.mxu0 0.0
    %675 = vmatpush1.msra.mxu0 0.0
    %676 = vmatprep.subr.mxu0 0.0
    %677 = vmatpush1.msra.mxu0 0.0
    %678 = vmatprep.subr.mxu0 0.0
    %679 = vmatpush1.msra.mxu0 0.0
    %680 = vmatprep.subr.mxu0 0.0
    %681 = vmatpush1.msra.mxu0 0.0
    %682 = vmatprep.subr.mxu0 0.0
    %683 = vmatpush1.msra.mxu0 0.0
    %684 = vmatprep.subr.mxu0 0.0
    %685 = vmatpush1.msra.mxu0 0.0
    %686 = vmatprep.subr.mxu0 0.0
    %687 = vmatpush1.msra.mxu0 0.0
    %688 = vmatprep.subr.mxu0 0.0
    %689 = vmatpush1.msra.mxu0 0.0
    %690 = vmatprep.subr.mxu0 0.0
    %691 = vmatpush1.msra.mxu0 0.0
    %692 = vmatprep.subr.mxu0 0.0
    %693 = vmatpush1.msra.mxu0 0.0
    %694 = vmatprep.subr.mxu0 0.0
    %695 = vmatpush1.msra.mxu0 0.0
    %696 = vmatprep.subr.mxu0 0.0
    %697 = vmatpush1.msra.mxu0 0.0
    %698 = vmatprep.subr.mxu0 0.0
    %699 = vmatpush1.msra.mxu0 0.0
    %700 = vmatprep.subr.mxu0 0.0
    %701 = vmatpush1.msra.mxu0 0.0
    %702 = vmatprep.subr.mxu0 0.0
    %703 = vmatpush1.msra.mxu0 0.0
    %704 = vmatprep.subr.mxu0 0.0
    %705 = vmatpush1.msra.mxu0 0.0
    %706 = vmatprep.subr.mxu0 0.0
    %707 = vmatpush1.msra.mxu0 0.0
    %708 = vmatprep.subr.mxu0 0.0
    %709 = vmatpush1.msra.mxu0 0.0
    %710 = vmatprep.subr.mxu0 0.0
    %711 = vmatpush1.msra.mxu0 0.0
    %712 = vmatprep.subr.mxu0 0.0
    %713 = vmatpush1.msra.mxu0 0.0
    %714 = vmatprep.subr.mxu0 0.0
    %715 = vmatpush1.msra.mxu0 0.0
    %716 = vmatprep.subr.mxu0 0.0
    %717 = vmatpush1.msra.mxu0 0.0
    %718 = vmatprep.subr.mxu0 0.0
    %719 = vmatpush1.msra.mxu0 0.0
    %720 = vmatprep.subr.mxu0 0.0
    %721 = vmatpush1.msra.mxu0 0.0
    %722 = vmatprep.mubr.f32.mxu0 0.0
    %723 = vmatmul.mubr.f32.gmra.mrb[0].mxu0 %v652
    %v724 = vpop.f32.mrb[0].mxu0
    %v725 = vadd.f32 %v646, %v724
    %v726 = vpop.f32.mrb[0].mxu0
    %v727 = vadd.f32 %v648, %v726
    %728 = vdwg.mxu0
    %v729 = vld [vmem:[#allocation3] sm:$0xff]
    %730 = vrot.lane.b32.xlu0 %v563, 120
    %v731 = vpop.permute.xlu0 %730
    %v733 = vcombine.high %v729, %v729
    %v734 = vsel %vm571, %v731, 0
    %v736 = vsel %vm574, %v729, 0
    %v738 = vsel %vm574, %v733, 0
    %740 = vmatprep.subr.mxu0 %v738
    %741 = vmatpush1.msra.mxu0 %v736
    %742 = vmatprep.subr.mxu0 0.0
    %743 = vmatpush1.msra.mxu0 0.0
    %744 = vmatprep.subr.mxu0 0.0
    %745 = vmatpush1.msra.mxu0 0.0
    %746 = vmatprep.subr.mxu0 0.0
    %747 = vmatpush1.msra.mxu0 0.0
    %748 = vmatprep.subr.mxu0 0.0
    %749 = vmatpush1.msra.mxu0 0.0
    %750 = vmatprep.subr.mxu0 0.0
    %751 = vmatpush1.msra.mxu0 0.0
    %752 = vmatprep.subr.mxu0 0.0
    %753 = vmatpush1.msra.mxu0 0.0
    %754 = vmatprep.subr.mxu0 0.0
    %755 = vmatpush1.msra.mxu0 0.0
    %756 = vmatprep.subr.mxu0 0.0
    %757 = vmatpush1.msra.mxu0 0.0
    %758 = vmatprep.subr.mxu0 0.0
    %759 = vmatpush1.msra.mxu0 0.0
    %760 = vmatprep.subr.mxu0 0.0
    %761 = vmatpush1.msra.mxu0 0.0
    %762 = vmatprep.subr.mxu0 0.0
    %763 = vmatpush1.msra.mxu0 0.0
    %764 = vmatprep.subr.mxu0 0.0
    %765 = vmatpush1.msra.mxu0 0.0
    %766 = vmatprep.subr.mxu0 0.0
    %767 = vmatpush1.msra.mxu0 0.0
    %768 = vmatprep.subr.mxu0 0.0
    %769 = vmatpush1.msra.mxu0 0.0
    %770 = vmatprep.subr.mxu0 0.0
    %771 = vmatpush1.msra.mxu0 0.0
    %772 = vmatprep.subr.mxu0 0.0
    %773 = vmatpush1.msra.mxu0 0.0
    %774 = vmatprep.subr.mxu0 0.0
    %775 = vmatpush1.msra.mxu0 0.0
    %776 = vmatprep.subr.mxu0 0.0
    %777 = vmatpush1.msra.mxu0 0.0
    %778 = vmatprep.subr.mxu0 0.0
    %779 = vmatpush1.msra.mxu0 0.0
    %780 = vmatprep.subr.mxu0 0.0
    %781 = vmatpush1.msra.mxu0 0.0
    %782 = vmatprep.subr.mxu0 0.0
    %783 = vmatpush1.msra.mxu0 0.0
    %784 = vmatprep.subr.mxu0 0.0
    %785 = vmatpush1.msra.mxu0 0.0
    %786 = vmatprep.subr.mxu0 0.0
    %787 = vmatpush1.msra.mxu0 0.0
    %788 = vmatprep.subr.mxu0 0.0
    %789 = vmatpush1.msra.mxu0 0.0
    %790 = vmatprep.subr.mxu0 0.0
    %791 = vmatpush1.msra.mxu0 0.0
    %792 = vmatprep.subr.mxu0 0.0
    %793 = vmatpush1.msra.mxu0 0.0
    %794 = vmatprep.subr.mxu0 0.0
    %795 = vmatpush1.msra.mxu0 0.0
    %796 = vmatprep.subr.mxu0 0.0
    %797 = vmatpush1.msra.mxu0 0.0
    %798 = vmatprep.subr.mxu0 0.0
    %799 = vmatpush1.msra.mxu0 0.0
    %800 = vmatprep.subr.mxu0 0.0
    %801 = vmatpush1.msra.mxu0 0.0
    %802 = vmatprep.subr.mxu0 0.0
    %803 = vmatpush1.msra.mxu0 0.0
    %804 = vmatprep.mubr.f32.mxu0 0.0
    %805 = vmatmul.mubr.f32.gmra.mrb[0].mxu0 %v734
    %v806 = vpop.f32.mrb[0].mxu0
    %v807 = vadd.f32 0.0, %v806
    %v808 = vpop.f32.mrb[0].mxu0
    %v809 = vadd.f32 0.0, %v808
    %810 = vdwg.mxu0
    %v811 = vadd.f32 %v725, %v807
    %v812 = vadd.f32 %v727, %v809
    %813 = vset.pattern.permute.xlu0 3
    %814 = vperm.xlu0 %813, %v428
    %v815 = vpop.permute.xlu0 %814
    %v817 = vadd.f32 %v811, %v815
    %v818 = vadd.f32 %v812, %v815
    %v819 = vmul.f32 %v817, %v519
    %v820 = vmul.f32 %v818, %v523
    %v821 = vadd.f32 %v819, %v820
    %822 = vadd.xlane.f32.xlu0 %v821
    %v823 = vpop.xlane.xlu0 %822
    %v824 = vmul.f32 %v823, 0.0625
    %v825 = vmul.f32 %v819, %v817
    %v826 = vmul.f32 %v820, %v818
    %v827 = vadd.f32 %v825, %v826
    %828 = vadd.xlane.f32.xlu0 %v827
    %v829 = vpop.xlane.xlu0 %828
    %v830 = vmul.f32 %v829, 0.0625
    %v831 = vmul.f32 %v824, %v824
    %v832 = vsub.f32 %v830, %v831
    %v833 = vmax.f32 %v832, 0.0
    %v834 = vsub.f32 %v817, %v824
    %v835 = vsub.f32 %v818, %v824
    %v836 = vadd.f32 %v833, 1e-05
    %v837 = vrsqrt.pop %v836
    %v838 = vmul.f32 %v834, %v837
    %v839 = vmul.f32 %v835, %v837
    %840 = vset.pattern.permute.xlu0 4
    %841 = vperm.xlu0 %840, %v428
    %v842 = vpop.permute.xlu0 %841
    %v844 = vmul.f32 %v838, %v842
    %v845 = vmul.f32 %v839, %v842
    %846 = vset.pattern.permute.xlu0 5
    %847 = vperm.xlu0 %846, %v428
    %v848 = vpop.permute.xlu0 %847
    %v850 = vadd.f32 %v844, %v848
    %v851 = vadd.f32 %v845, %v848
    %v852 = vmul.f32 %v561, %v850
    %v853 = vmul.f32 %v562, %v851
    %v854 = vmul.f32 %v852, %v519
    %v855 = vmul.f32 %v853, %v523
    %v856 = vadd.f32 %v854, %v855
    %857 = vadd.xlane.f32.xlu0 %v856
    %v858 = vpop.xlane.xlu0 %857
    %v859 = vmul.f32 %v858, 0.0625
    %v860 = vmul.f32 %v854, %v852
    %v861 = vmul.f32 %v855, %v853
    %v862 = vadd.f32 %v860, %v861
    %863 = vadd.xlane.f32.xlu0 %v862
    %v864 = vpop.xlane.xlu0 %863
    %v865 = vmul.f32 %v864, 0.0625
    %v866 = vmul.f32 %v859, %v859
    %v867 = vsub.f32 %v865, %v866
    %v868 = vmax.f32 %v867, 0.0
    %v869 = vsub.f32 %v852, %v859
    %v870 = vsub.f32 %v853, %v859
    %v871 = vadd.f32 %v868, 1e-05
    %v872 = vrsqrt.pop %v871
    %v873 = vmul.f32 %v869, %v872
    %v874 = vmul.f32 %v870, %v872
    %875 = vset.pattern.permute.xlu0 6
    %876 = vperm.xlu0 %875, %v428
    %v877 = vpop.permute.xlu0 %876
    %v879 = vmul.f32 %v873, %v877
    %v880 = vmul.f32 %v874, %v877
    %881 = vset.pattern.permute.xlu0 7
    %882 = vperm.xlu0 %881, %v428
    %v883 = vpop.permute.xlu0 %882
    %v885 = vadd.f32 %v879, %v883
    %v886 = vadd.f32 %v880, %v883
    %vm887 = vcmp.ge.f32.partialorder %v885, 0.0
    %vm888 = vcmp.ge.f32.partialorder %v886, 0.0
    %v889 = vmul.f32 %v885, 0.1
    %v890 = vmul.f32 %v886, 0.1
    %v891 = vsel %vm887, %v885, %v889
    %v892 = vsel %vm888, %v886, %v890
    %893 = vst [vmem:[#allocation8] sm:$0xff] %v891
    %894 = vst [vmem:[#allocation8 + $0x8] sm:$0xff] %v892
    // Predicated region
    $region50: #{tpu_custom_call.1} parent=1 // pred_check
      _
    $region51: #{tpu_custom_call.1} parent=1 // pred_check_branch
      %896 = sbr.rel (0) target = $region53
    $region52: #{tpu_custom_call.1} parent=1 // pred_region
      %s898 = ssub.s32 256, 256
      %899 = vsyncadd [#allocation5], %s898
      %s901 = sshll.u32 [#allocation8], 4
      %s902 = int_to_ptr.vmem [resolvable:$true] %s901
      %904 = dma.vmem_to_hbm [thread:$0]  %s902, 256, %s9, [#allocation5]
    $region53: #{tpu_custom_call.1} parent=1 // pred_fallthru
      _
    // Predicated region
    $region54: #{tpu_custom_call.1} parent=1 // pred_check
      _
    $region55: #{tpu_custom_call.1} parent=1 // pred_check_branch
      %906 = sbr.rel (0) target = $region57
    $region56: #{tpu_custom_call.1} parent=1 // pred_region
      %907 = dma.done [#allocation5], 256
    $region57: #{tpu_custom_call.1} parent=1 // pred_fallthru
      _
    %908 = vsyncpa [#allocation4], 1
    %909 = vsyncpa [#allocation7], 1
    %910 = vsyncpa [#allocation5], 1

</llo_original>
